<compile_context>
chip_gen: v7x
topology: tpu7x:2x2x1
jax: 0.10.0
libtpu: 0.0.40
codegen_flags: <defaults>
</compile_context>

<pallas_src>
import functools
import math

import jax
import jax.numpy as jnp
from jax.experimental import pallas as pl
from jax.experimental.pallas import tpu as pltpu


def _intermediate_kernel(hi_ref, hs_ref, win_ref, wout_ref, p_ref, out_ref,
                         *, seq_len: int, eps: float = 1e-5):
    TM = hi_ref.shape[0]
    H = wout_ref.shape[0]

    hi = hi_ref[...]                       # (TM, H) f32 residual for LN_I
    hs = hs_ref[...]                       # (TM, H) f32 residual for LN_S
    cdt = win_ref.dtype                    # MXU operand dtype (f32 or bf16)
    hi_c = hi.astype(cdt)
    hs_c = hs.astype(cdt)

    def dot(a, w):
        return jnp.dot(a, w, preferred_element_type=jnp.float32)

    # dense_in (6H -> H) without ever forming the 6H concat:
    # W_in^T rows [0:2H] hit x=[hI,hS], [2H:4H] hit the left-shifted window,
    # [4H:6H] hit the right-shifted window.
    y0 = dot(hi_c, win_ref[0 * H:1 * H, :]) + dot(hs_c, win_ref[1 * H:2 * H, :])
    y1 = dot(hi_c, win_ref[2 * H:3 * H, :]) + dot(hs_c, win_ref[3 * H:4 * H, :])
    y2 = dot(hi_c, win_ref[4 * H:5 * H, :]) + dot(hs_c, win_ref[5 * H:6 * H, :])

    # Apply the window shift on the H-wide matmul results (cheaper than
    # shifting 2H-wide inputs).  Tile rows start at a multiple of seq_len, so
    # row % seq_len is the token position; zero the per-sequence boundaries.
    zrow = jnp.zeros((1, H), jnp.float32)
    y1s = jnp.concatenate([zrow, y1[:-1, :]], axis=0)     # row r <- y1[r-1]
    y2s = jnp.concatenate([y2[1:, :], zrow], axis=0)      # row r <- y2[r+1]
    t = jax.lax.broadcasted_iota(jnp.int32, (TM, H), 0) % seq_len
    y1s = jnp.where(t == 0, 0.0, y1s)                     # no left neighbor
    y2s = jnp.where(t == seq_len - 1, 0.0, y2s)           # no right neighbor

    b_in = p_ref[0:1, :]
    b_out = p_ref[1:2, :]
    h1 = jnp.maximum(y0 + y1s + y2s + b_in, 0.0)          # dense_in + ReLU
    h2 = dot(h1.astype(cdt), wout_ref[...]) + b_out       # dense_out
    # TODO(synk): dropout is treated as eval-mode identity (no RNG masking).

    def layer_norm(v, gamma, beta):
        mu = jnp.mean(v, axis=-1, keepdims=True)
        var = jnp.mean(v * v, axis=-1, keepdims=True) - mu * mu  # single pass
        return (v - mu) * jax.lax.rsqrt(var + eps) * gamma + beta

    o_i = layer_norm(h2 + hi, p_ref[2:3, :], p_ref[3:4, :])
    o_s = layer_norm(h2 + hs, p_ref[4:5, :], p_ref[5:6, :])
    # Single lane-dense (TM, 2H) store instead of two narrow (TM, H) stores.
    out_ref[...] = jnp.concatenate([o_i, o_s], axis=1)


def intermediate_i_s(hidden_states_I, hidden_states_S, params,
                     *, weight_dtype=None, target_rows=256):
    """hidden_states_I, hidden_states_S: (B, S, H) float32."""
    B, S, H = hidden_states_I.shape
    assert hidden_states_S.shape == (B, S, H)

    # Row tile = TB whole sequences (so shifts never cross a tile), with
    # TB*S a multiple of 8 sublanes and ~target_rows rows per tile.
    unit = 8 // math.gcd(S, 8)                       # smallest TB with TB*S % 8 == 0
    tb = max(unit, (max(1, target_rows // S) // unit) * unit)
    tb = min(tb, pl.cdiv(B, unit) * unit)            # don't over-pad tiny batches
    B_pad = pl.cdiv(B, tb) * tb
    TM = tb * S
    rows = B_pad * S

    def flat(x):
        if B_pad != B:
            x = jnp.concatenate([x, jnp.zeros((B_pad - B, S, H), x.dtype)], axis=0)
        return x.reshape(rows, H)

    hi = flat(hidden_states_I)
    hs = flat(hidden_states_S)

    w_dtype = params["w_in"].dtype if weight_dtype is None else weight_dtype
    w_in_t = params["w_in"].T.astype(w_dtype)        # (6H, H)
    w_out_t = params["w_out"].T.astype(w_dtype)      # (H, H)
    # Stack all six small vectors into one (8, H) array (pad to 8 sublanes).
    p = jnp.stack([params["b_in"], params["b_out"],
                   params["ln_I_g"], params["ln_I_b"],
                   params["ln_S_g"], params["ln_S_b"],
                   jnp.zeros((H,), jnp.float32), jnp.zeros((H,), jnp.float32)],
                  axis=0).astype(jnp.float32)

    grid = (rows // TM,)
    row_spec_h = pl.BlockSpec((TM, H), lambda i: (i, 0))
    full = lambda shape: pl.BlockSpec(shape, lambda i: (0, 0))

    out = pl.pallas_call(
        functools.partial(_intermediate_kernel, seq_len=S),
        out_shape=jax.ShapeDtypeStruct((rows, 2 * H), jnp.float32),
        grid_spec=pltpu.PrefetchScalarGridSpec(
            num_scalar_prefetch=0,
            grid=grid,
            in_specs=[
                row_spec_h,                 # hidden_states_I rows
                row_spec_h,                 # hidden_states_S rows
                full((6 * H, H)),           # W_in^T
                full((H, H)),               # W_out^T
                full((8, H)),               # stacked biases / LayerNorm params
            ],
            out_specs=pl.BlockSpec((TM, 2 * H), lambda i: (i, 0)),
        ),
        compiler_params=pltpu.CompilerParams(
            dimension_semantics=("parallel",),
            vmem_limit_bytes=48 * 1024 * 1024),
    )(hi, hs, w_in_t, w_out_t, p)

    out = out.reshape(B_pad, S, 2 * H)[:B]
    return out[:, :, :H], out[:, :, H:]


def init_params(key, hidden_size):
    """Deterministic synthetic parameters matching nn.Linear / nn.LayerNorm shapes."""
    H = hidden_size
    k1, k2, k3, k4 = jax.random.split(key, 4)
    bound_in = 1.0 / jnp.sqrt(6.0 * H)
    bound_out = 1.0 / jnp.sqrt(1.0 * H)
    return {
        "w_in": jax.random.uniform(k1, (H, 6 * H), jnp.float32, -bound_in, bound_in),
        "b_in": jax.random.uniform(k2, (H,), jnp.float32, -bound_in, bound_in),
        "w_out": jax.random.uniform(k3, (H, H), jnp.float32, -bound_out, bound_out),
        "b_out": jax.random.uniform(k4, (H,), jnp.float32, -bound_out, bound_out),
        "ln_I_g": jnp.ones((H,), jnp.float32),
        "ln_I_b": jnp.zeros((H,), jnp.float32),
        "ln_S_g": jnp.ones((H,), jnp.float32),
        "ln_S_b": jnp.zeros((H,), jnp.float32),
    }


def _reference(hidden_states_I, hidden_states_S, params, eps=1e-5):
    """Pure-JAX reference (mirrors the PyTorch module exactly)."""
    B, S, H = hidden_states_I.shape
    x = jnp.concatenate([hidden_states_I, hidden_states_S], axis=2)
    pad = jnp.zeros((B, 1, 2 * H), x.dtype)
    h_left = jnp.concatenate([pad, x[:, : S - 1, :]], axis=1)
    h_right = jnp.concatenate([x[:, 1:, :], pad], axis=1)
    x_in = jnp.concatenate([x, h_left, h_right], axis=2)
    h = jnp.maximum(x_in @ params["w_in"].T + params["b_in"], 0.0)
    h = h @ params["w_out"].T + params["b_out"]

    def ln(v, g, b):
        mu = jnp.mean(v, -1, keepdims=True)
        var = jnp.mean((v - mu) ** 2, -1, keepdims=True)
        return (v - mu) / jnp.sqrt(var + eps) * g + b

    return (ln(h + hidden_states_I, params["ln_I_g"], params["ln_I_b"]),
            ln(h + hidden_states_S, params["ln_S_g"], params["ln_S_b"]))


if __name__ == "__main__":
    B, S, H = 2, 8, 32
    key = jax.random.PRNGKey(0)
    k_i, k_s, k_p = jax.random.split(key, 3)
    hidden_states_I = jax.random.normal(k_i, (B, S, H), jnp.float32)
    hidden_states_S = jax.random.normal(k_s, (B, S, H), jnp.float32)
    params = init_params(k_p, H)

    ref_I, ref_S = _reference(hidden_states_I, hidden_states_S, params)

    # f32 weights: exact-tolerance check.
    out_I, out_S = intermediate_i_s(hidden_states_I, hidden_states_S, params)
    jax.block_until_ready((out_I, out_S))
    assert out_I.shape == (B, S, H) and out_S.shape == (B, S, H)
    assert jnp.allclose(out_I, ref_I, atol=1e-4, rtol=1e-4)
    assert jnp.allclose(out_S, ref_S, atol=1e-4, rtol=1e-4)

    # bf16 MXU operands (v6e/v7x path): f32 accumulation + f32 LN math.
    out_I16, out_S16 = intermediate_i_s(hidden_states_I, hidden_states_S, params,
                                        weight_dtype=jnp.bfloat16)
    jax.block_until_ready((out_I16, out_S16))
    assert jnp.allclose(out_I16, ref_I, atol=5e-2, rtol=5e-2)
    assert jnp.allclose(out_S16, ref_S, atol=5e-2, rtol=5e-2)

    print("KERNEL_OK")
</pallas_src>

<mosaic_0001>
module attributes {stable_mosaic.version = 11 : i64} {
  func.func @_intermediate_kernel(%arg0: i32, %arg1: memref<16x32xf32, #tpu.memory_space<vmem>>, %arg2: memref<16x32xf32, #tpu.memory_space<vmem>>, %arg3: memref<192x32xf32, #tpu.memory_space<vmem>>, %arg4: memref<32x32xf32, #tpu.memory_space<vmem>>, %arg5: memref<8x32xf32, #tpu.memory_space<vmem>>, %arg6: memref<16x64xf32, #tpu.memory_space<vmem>>) attributes {dimension_semantics = [#tpu.dimension_semantics<parallel>], iteration_bounds = array<i64: 1>, scalar_prefetch = 0 : i64, scratch_operands = 0 : i64, tpu.core_type = #tpu.core_type<tc>, window_params = [{transform_indices = @transform_0, window_bounds = array<i64: 16, 32>}, {transform_indices = @transform_1, window_bounds = array<i64: 16, 32>}, {pipeline_mode = #tpu.pipeline_mode<synchronous>, transform_indices = @transform_2, window_bounds = array<i64: 192, 32>}, {pipeline_mode = #tpu.pipeline_mode<synchronous>, transform_indices = @transform_3, window_bounds = array<i64: 32, 32>}, {pipeline_mode = #tpu.pipeline_mode<synchronous>, transform_indices = @transform_4, window_bounds = array<i64: 8, 32>}, {transform_indices = @transform_5, window_bounds = array<i64: 16, 64>}]} {
    %c0 = arith.constant 0 : index
    %c0_0 = arith.constant 0 : index
    %0 = vector.load %arg1[%c0, %c0_0] : memref<16x32xf32, #tpu.memory_space<vmem>>, vector<16x32xf32>
    %c0_1 = arith.constant 0 : index
    %c0_2 = arith.constant 0 : index
    %1 = vector.load %arg2[%c0_1, %c0_2] : memref<16x32xf32, #tpu.memory_space<vmem>>, vector<16x32xf32>
    %c0_3 = arith.constant 0 : index
    %c0_4 = arith.constant 0 : index
    %2 = vector.load %arg3[%c0_3, %c0_4] : memref<192x32xf32, #tpu.memory_space<vmem>>, vector<32x32xf32>
    %cst = arith.constant dense<0.000000e+00> : vector<16x32xf32>
    %3 = tpu.matmul %0, %2, %cst {dimension_numbers = #tpu.dot_dimension_numbers<[1], [0], [0], [1], [0, 0, 1, 1], [], []>} : vector<16x32xf32>, vector<32x32xf32>, vector<16x32xf32> -> vector<16x32xf32>
    %c32 = arith.constant 32 : index
    %c0_5 = arith.constant 0 : index
    %4 = vector.load %arg3[%c32, %c0_5] : memref<192x32xf32, #tpu.memory_space<vmem>>, vector<32x32xf32>
    %cst_6 = arith.constant dense<0.000000e+00> : vector<16x32xf32>
    %5 = tpu.matmul %1, %4, %cst_6 {dimension_numbers = #tpu.dot_dimension_numbers<[1], [0], [0], [1], [0, 0, 1, 1], [], []>} : vector<16x32xf32>, vector<32x32xf32>, vector<16x32xf32> -> vector<16x32xf32>
    %6 = arith.addf %3, %5 : vector<16x32xf32>
    %c64 = arith.constant 64 : index
    %c0_7 = arith.constant 0 : index
    %7 = vector.load %arg3[%c64, %c0_7] : memref<192x32xf32, #tpu.memory_space<vmem>>, vector<32x32xf32>
    %cst_8 = arith.constant dense<0.000000e+00> : vector<16x32xf32>
    %8 = tpu.matmul %0, %7, %cst_8 {dimension_numbers = #tpu.dot_dimension_numbers<[1], [0], [0], [1], [0, 0, 1, 1], [], []>} : vector<16x32xf32>, vector<32x32xf32>, vector<16x32xf32> -> vector<16x32xf32>
    %c96 = arith.constant 96 : index
    %c0_9 = arith.constant 0 : index
    %9 = vector.load %arg3[%c96, %c0_9] : memref<192x32xf32, #tpu.memory_space<vmem>>, vector<32x32xf32>
    %cst_10 = arith.constant dense<0.000000e+00> : vector<16x32xf32>
    %10 = tpu.matmul %1, %9, %cst_10 {dimension_numbers = #tpu.dot_dimension_numbers<[1], [0], [0], [1], [0, 0, 1, 1], [], []>} : vector<16x32xf32>, vector<32x32xf32>, vector<16x32xf32> -> vector<16x32xf32>
    %11 = arith.addf %8, %10 : vector<16x32xf32>
    %c128 = arith.constant 128 : index
    %c0_11 = arith.constant 0 : index
    %12 = vector.load %arg3[%c128, %c0_11] : memref<192x32xf32, #tpu.memory_space<vmem>>, vector<32x32xf32>
    %cst_12 = arith.constant dense<0.000000e+00> : vector<16x32xf32>
    %13 = tpu.matmul %0, %12, %cst_12 {dimension_numbers = #tpu.dot_dimension_numbers<[1], [0], [0], [1], [0, 0, 1, 1], [], []>} : vector<16x32xf32>, vector<32x32xf32>, vector<16x32xf32> -> vector<16x32xf32>
    %c160 = arith.constant 160 : index
    %c0_13 = arith.constant 0 : index
    %14 = vector.load %arg3[%c160, %c0_13] : memref<192x32xf32, #tpu.memory_space<vmem>>, vector<32x32xf32>
    %cst_14 = arith.constant dense<0.000000e+00> : vector<16x32xf32>
    %15 = tpu.matmul %1, %14, %cst_14 {dimension_numbers = #tpu.dot_dimension_numbers<[1], [0], [0], [1], [0, 0, 1, 1], [], []>} : vector<16x32xf32>, vector<32x32xf32>, vector<16x32xf32> -> vector<16x32xf32>
    %16 = arith.addf %13, %15 : vector<16x32xf32>
    %cst_15 = arith.constant 0.000000e+00 : f32
    %17 = vector.broadcast %cst_15 : f32 to vector<1x32xf32>
    %18 = vector.extract_strided_slice %11 {offsets = [0, 0], sizes = [15, 32], strides = [1, 1]} : vector<16x32xf32> to vector<15x32xf32>
    %19 = tpu.concatenate %17, %18 in 0 : vector<1x32xf32>, vector<15x32xf32> -> vector<16x32xf32>
    %20 = vector.extract_strided_slice %16 {offsets = [1, 0], sizes = [15, 32], strides = [1, 1]} : vector<16x32xf32> to vector<15x32xf32>
    %21 = tpu.concatenate %20, %17 in 0 : vector<15x32xf32>, vector<1x32xf32> -> vector<16x32xf32>
    %22 = tpu.iota {dimensions = array<i32: 0>} : vector<16x32xi32>
    %c8_i32 = arith.constant 8 : i32
    %c0_i32 = arith.constant 0 : i32
    %23 = arith.cmpi eq, %c8_i32, %c0_i32 : i32
    %c1_i32 = arith.constant 1 : i32
    %24 = arith.select %23, %c1_i32, %c8_i32 : i32
    %25 = vector.broadcast %24 : i32 to vector<16x32xi32>
    %26 = arith.remsi %22, %25 : vector<16x32xi32>
    %c0_i32_16 = arith.constant 0 : i32
    %27 = vector.broadcast %c0_i32_16 : i32 to vector<16x32xi32>
    %28 = arith.cmpi ne, %26, %27 : vector<16x32xi32>
    %c0_i32_17 = arith.constant 0 : i32
    %29 = vector.broadcast %c0_i32_17 : i32 to vector<16x32xi32>
    %30 = arith.cmpi slt, %26, %29 : vector<16x32xi32>
    %c0_i32_18 = arith.constant 0 : i32
    %31 = arith.cmpi slt, %24, %c0_i32_18 : i32
    %32 = vector.broadcast %31 : i1 to vector<16x32xi1>
    %33 = vector.broadcast %32 : vector<16x32xi1> to vector<16x32xi1>
    %34 = arith.xori %30, %33 : vector<16x32xi1>
    %35 = arith.andi %34, %28 : vector<16x32xi1>
    %36 = vector.broadcast %24 : i32 to vector<16x32xi32>
    %37 = arith.addi %26, %36 : vector<16x32xi32>
    %38 = arith.select %35, %37, %26 : vector<16x32xi1>, vector<16x32xi32>
    %c0_i32_19 = arith.constant 0 : i32
    %39 = vector.broadcast %c0_i32_19 : i32 to vector<16x32xi32>
    %40 = arith.cmpi eq, %38, %39 : vector<16x32xi32>
    %cst_20 = arith.constant 0.000000e+00 : f32
    %41 = vector.broadcast %cst_20 : f32 to vector<16x32xf32>
    %42 = arith.select %40, %41, %19 : vector<16x32xi1>, vector<16x32xf32>
    %c7_i32 = arith.constant 7 : i32
    %43 = vector.broadcast %c7_i32 : i32 to vector<16x32xi32>
    %44 = arith.cmpi eq, %38, %43 : vector<16x32xi32>
    %cst_21 = arith.constant 0.000000e+00 : f32
    %45 = vector.broadcast %cst_21 : f32 to vector<16x32xf32>
    %46 = arith.select %44, %45, %21 : vector<16x32xi1>, vector<16x32xf32>
    %c0_22 = arith.constant 0 : index
    %c0_23 = arith.constant 0 : index
    %47 = vector.load %arg5[%c0_22, %c0_23] : memref<8x32xf32, #tpu.memory_space<vmem>>, vector<1x32xf32>
    %c1 = arith.constant 1 : index
    %c0_24 = arith.constant 0 : index
    %48 = vector.load %arg5[%c1, %c0_24] : memref<8x32xf32, #tpu.memory_space<vmem>>, vector<1x32xf32>
    %49 = arith.addf %6, %42 : vector<16x32xf32>
    %50 = arith.addf %49, %46 : vector<16x32xf32>
    %51 = vector.broadcast %47 : vector<1x32xf32> to vector<16x32xf32>
    %52 = arith.addf %50, %51 : vector<16x32xf32>
    %cst_25 = arith.constant 0.000000e+00 : f32
    %53 = vector.broadcast %cst_25 : f32 to vector<16x32xf32>
    %54 = arith.maximumf %52, %53 : vector<16x32xf32>
    %c0_26 = arith.constant 0 : index
    %c0_27 = arith.constant 0 : index
    %55 = vector.load %arg4[%c0_26, %c0_27] : memref<32x32xf32, #tpu.memory_space<vmem>>, vector<32x32xf32>
    %cst_28 = arith.constant dense<0.000000e+00> : vector<16x32xf32>
    %56 = tpu.matmul %54, %55, %cst_28 {dimension_numbers = #tpu.dot_dimension_numbers<[1], [0], [0], [1], [0, 0, 1, 1], [], []>} : vector<16x32xf32>, vector<32x32xf32>, vector<16x32xf32> -> vector<16x32xf32>
    %57 = vector.broadcast %48 : vector<1x32xf32> to vector<16x32xf32>
    %58 = arith.addf %56, %57 : vector<16x32xf32>
    %59 = arith.addf %58, %0 : vector<16x32xf32>
    %c2 = arith.constant 2 : index
    %c0_29 = arith.constant 0 : index
    %60 = vector.load %arg5[%c2, %c0_29] : memref<8x32xf32, #tpu.memory_space<vmem>>, vector<1x32xf32>
    %c3 = arith.constant 3 : index
    %c0_30 = arith.constant 0 : index
    %61 = vector.load %arg5[%c3, %c0_30] : memref<8x32xf32, #tpu.memory_space<vmem>>, vector<1x32xf32>
    %cst_31 = arith.constant dense<0.000000e+00> : vector<16xf32>
    %62 = vector.multi_reduction <add>, %59, %cst_31 [1] : vector<16x32xf32> to vector<16xf32>
    %63 = vector.shape_cast %62 : vector<16xf32> to vector<16x1xf32>
    %cst_32 = arith.constant 3.200000e+01 : f32
    %64 = vector.broadcast %cst_32 : f32 to vector<16x1xf32>
    %65 = arith.divf %63, %64 : vector<16x1xf32>
    %66 = arith.mulf %59, %59 : vector<16x32xf32>
    %cst_33 = arith.constant dense<0.000000e+00> : vector<16xf32>
    %67 = vector.multi_reduction <add>, %66, %cst_33 [1] : vector<16x32xf32> to vector<16xf32>
    %68 = vector.shape_cast %67 : vector<16xf32> to vector<16x1xf32>
    %cst_34 = arith.constant 3.200000e+01 : f32
    %69 = vector.broadcast %cst_34 : f32 to vector<16x1xf32>
    %70 = arith.divf %68, %69 : vector<16x1xf32>
    %71 = arith.mulf %65, %65 : vector<16x1xf32>
    %72 = arith.subf %70, %71 : vector<16x1xf32>
    %73 = vector.broadcast %65 : vector<16x1xf32> to vector<16x32xf32>
    %74 = arith.subf %59, %73 : vector<16x32xf32>
    %cst_35 = arith.constant 9.99999974E-6 : f32
    %75 = vector.broadcast %cst_35 : f32 to vector<16x1xf32>
    %76 = arith.addf %72, %75 : vector<16x1xf32>
    %77 = math.rsqrt %76 : vector<16x1xf32>
    %78 = vector.broadcast %77 : vector<16x1xf32> to vector<16x32xf32>
    %79 = arith.mulf %74, %78 : vector<16x32xf32>
    %80 = vector.broadcast %60 : vector<1x32xf32> to vector<16x32xf32>
    %81 = arith.mulf %79, %80 : vector<16x32xf32>
    %82 = vector.broadcast %61 : vector<1x32xf32> to vector<16x32xf32>
    %83 = arith.addf %81, %82 : vector<16x32xf32>
    %84 = arith.addf %58, %1 : vector<16x32xf32>
    %c4 = arith.constant 4 : index
    %c0_36 = arith.constant 0 : index
    %85 = vector.load %arg5[%c4, %c0_36] : memref<8x32xf32, #tpu.memory_space<vmem>>, vector<1x32xf32>
    %c5 = arith.constant 5 : index
    %c0_37 = arith.constant 0 : index
    %86 = vector.load %arg5[%c5, %c0_37] : memref<8x32xf32, #tpu.memory_space<vmem>>, vector<1x32xf32>
    %cst_38 = arith.constant dense<0.000000e+00> : vector<16xf32>
    %87 = vector.multi_reduction <add>, %84, %cst_38 [1] : vector<16x32xf32> to vector<16xf32>
    %88 = vector.shape_cast %87 : vector<16xf32> to vector<16x1xf32>
    %cst_39 = arith.constant 3.200000e+01 : f32
    %89 = vector.broadcast %cst_39 : f32 to vector<16x1xf32>
    %90 = arith.divf %88, %89 : vector<16x1xf32>
    %91 = arith.mulf %84, %84 : vector<16x32xf32>
    %cst_40 = arith.constant dense<0.000000e+00> : vector<16xf32>
    %92 = vector.multi_reduction <add>, %91, %cst_40 [1] : vector<16x32xf32> to vector<16xf32>
    %93 = vector.shape_cast %92 : vector<16xf32> to vector<16x1xf32>
    %cst_41 = arith.constant 3.200000e+01 : f32
    %94 = vector.broadcast %cst_41 : f32 to vector<16x1xf32>
    %95 = arith.divf %93, %94 : vector<16x1xf32>
    %96 = arith.mulf %90, %90 : vector<16x1xf32>
    %97 = arith.subf %95, %96 : vector<16x1xf32>
    %98 = vector.broadcast %90 : vector<16x1xf32> to vector<16x32xf32>
    %99 = arith.subf %84, %98 : vector<16x32xf32>
    %cst_42 = arith.constant 9.99999974E-6 : f32
    %100 = vector.broadcast %cst_42 : f32 to vector<16x1xf32>
    %101 = arith.addf %97, %100 : vector<16x1xf32>
    %102 = math.rsqrt %101 : vector<16x1xf32>
    %103 = vector.broadcast %102 : vector<16x1xf32> to vector<16x32xf32>
    %104 = arith.mulf %99, %103 : vector<16x32xf32>
    %105 = vector.broadcast %85 : vector<1x32xf32> to vector<16x32xf32>
    %106 = arith.mulf %104, %105 : vector<16x32xf32>
    %107 = vector.broadcast %86 : vector<1x32xf32> to vector<16x32xf32>
    %108 = arith.addf %106, %107 : vector<16x32xf32>
    %109 = tpu.concatenate %83, %108 in 1 : vector<16x32xf32>, vector<16x32xf32> -> vector<16x64xf32>
    %c0_43 = arith.constant 0 : index
    %c0_44 = arith.constant 0 : index
    %110 = vector.load %arg6[%c0_43, %c0_44] : memref<16x64xf32, #tpu.memory_space<vmem>>, vector<16x64xf32>
    tpu.vector_store %arg6[%c0_43, %c0_44], %109 {strides = array<i32>} : memref<16x64xf32, #tpu.memory_space<vmem>>, vector<16x64xf32>,
    return
  }
  func.func @transform_0(%arg0: i32) -> (i32, i32) {
    %c0_i32 = arith.constant 0 : i32
    %c0_i32_0 = arith.constant 0 : i32
    return %arg0, %c0_i32 : i32, i32
  }
  func.func @transform_1(%arg0: i32) -> (i32, i32) {
    %c0_i32 = arith.constant 0 : i32
    %c0_i32_0 = arith.constant 0 : i32
    return %arg0, %c0_i32 : i32, i32
  }
  func.func @transform_2(%arg0: i32) -> (i32, i32) {
    %c0_i32 = arith.constant 0 : i32
    %c0_i32_0 = arith.constant 0 : i32
    %c0_i32_1 = arith.constant 0 : i32
    return %c0_i32, %c0_i32_0 : i32, i32
  }
  func.func @transform_3(%arg0: i32) -> (i32, i32) {
    %c0_i32 = arith.constant 0 : i32
    %c0_i32_0 = arith.constant 0 : i32
    %c0_i32_1 = arith.constant 0 : i32
    return %c0_i32, %c0_i32_0 : i32, i32
  }
  func.func @transform_4(%arg0: i32) -> (i32, i32) {
    %c0_i32 = arith.constant 0 : i32
    %c0_i32_0 = arith.constant 0 : i32
    %c0_i32_1 = arith.constant 0 : i32
    return %c0_i32, %c0_i32_0 : i32, i32
  }
  func.func @transform_5(%arg0: i32) -> (i32, i32) {
    %c0_i32 = arith.constant 0 : i32
    %c0_i32_0 = arith.constant 0 : i32
    return %arg0, %c0_i32 : i32, i32
  }
}

</mosaic_0001>

<llo_original>
// kernel: tpu_custom_call.1
$region0: #{tpu_custom_call.1}
  #allocation0 [shape = 'u32[]', space=smem, size = 0x4, offset = 0x4, fixed_abs, tag = 'smem constant byte address 0x4 - core index']
  #allocation1 [shape = 'u32[144,128]{1,0:T(1,128)}', space=vmem, size = 0x12000, scoped, tag = 'internal scratch']
  %s0 = inlined_call_operand.vmem [shape: f32[16,32], index: 0, kind: input, shape index: {}]
  %s1 = inlined_call_operand.vmem [shape: f32[16,32], index: 1, kind: input, shape index: {}]
  %s2 = inlined_call_operand.vmem [shape: f32[192,32], index: 2, kind: input, shape index: {}]
  %s3 = inlined_call_operand.vmem [shape: f32[32,32], index: 3, kind: input, shape index: {}]
  %s4 = inlined_call_operand.vmem [shape: f32[8,32], index: 4, kind: input, shape index: {}]
  %s5 = inlined_call_operand.hbm [shape: f32[16,64], index: 5, kind: output, shape index: {}]
  %s6 = sld [smem:[#allocation0]]
  $region30: #{tpu_custom_call.1} parent=0
    _
  %s8 = ssub.s32 1, %s6
  %s9 = scalar_select 0, %s8, %s6
  $region1: #{tpu_custom_call.1} parent=0
    #allocation2 [shape = 'u8[8192]{0}', space=vmem, size = 0x2000, scoped, tag = 'output window, operand 0, single buffered']
    #allocation3 [shape = 's32[1]{0}', space=sflag, size = 0x4, scoped, tag = 'scoped memory for tpu_custom_call.1']
    %10 = vsyncpa [#allocation3], 0
    // Predicated region
    $region2: #{tpu_custom_call.1} parent=1 // pred_check
      _
    $region3: #{tpu_custom_call.1} parent=1 // pred_check_branch
      %12 = sbr.rel (0) target = $region5
    $region4: #{tpu_custom_call.1} parent=1 // pred_region
      _
    $region5: #{tpu_custom_call.1} parent=1 // pred_fallthru
      _
    // Predicated region
    $region6: #{tpu_custom_call.1} parent=1 // pred_check
      _
    $region7: #{tpu_custom_call.1} parent=1 // pred_check_branch
      %14 = sbr.rel (0) target = $region9
    $region8: #{tpu_custom_call.1} parent=1 // pred_region
      _
    $region9: #{tpu_custom_call.1} parent=1 // pred_fallthru
      _
    // Predicated region
    $region10: #{tpu_custom_call.1} parent=1 // pred_check
      _
    $region11: #{tpu_custom_call.1} parent=1 // pred_check_branch
      %16 = sbr.rel (0) target = $region13
    $region12: #{tpu_custom_call.1} parent=1 // pred_region
      _
    $region13: #{tpu_custom_call.1} parent=1 // pred_fallthru
      _
    // Predicated region
    $region14: #{tpu_custom_call.1} parent=1 // pred_check
      _
    $region15: #{tpu_custom_call.1} parent=1 // pred_check_branch
      %18 = sbr.rel (0) target = $region17
    $region16: #{tpu_custom_call.1} parent=1 // pred_region
      _
    $region17: #{tpu_custom_call.1} parent=1 // pred_fallthru
      _
    // Predicated region
    $region18: #{tpu_custom_call.1} parent=1 // pred_check
      _
    $region19: #{tpu_custom_call.1} parent=1 // pred_check_branch
      %20 = sbr.rel (0) target = $region21
    $region20: #{tpu_custom_call.1} parent=1 // pred_region
      _
    $region21: #{tpu_custom_call.1} parent=1 // pred_fallthru
      _
    %v21 = vld [vmem:[%s0] sm:$0xff]
    %v22 = vld [vmem:[%s0 + $0x8] sm:$0xff]
    %v23 = vld [vmem:[%s1] sm:$0xff]
    %v24 = vld [vmem:[%s1 + $0x8] sm:$0xff]
    %v25 = vld [vmem:[%s2] sm:$0xff]
    %v26 = vld [vmem:[%s2 + $0x8] sm:$0xff]
    %v27 = vld [vmem:[%s2 + $0x10] sm:$0xff]
    %v28 = vld [vmem:[%s2 + $0x18] sm:$0xff]
    %v29 = vld [vmem:[%s2 + $0x20] sm:$0xff]
    %v30 = vld [vmem:[%s2 + $0x28] sm:$0xff]
    %v31 = vld [vmem:[%s2 + $0x30] sm:$0xff]
    %v32 = vld [vmem:[%s2 + $0x38] sm:$0xff]
    %vm33 = vcmask 261120
    %v35 = vsel %vm33, %v23, 0
    %v38 = vsel %vm33, %v24, 0
    %40 = vmatprep.subr.mxu0 0.0
    %41 = vmatpush1.msra.mxu0 %v29
    %42 = vmatprep.subr.mxu0 0.0
    %43 = vmatpush1.msra.mxu0 %v30
    %44 = vmatprep.subr.mxu0 0.0
    %45 = vmatpush1.msra.mxu0 %v31
    %46 = vmatprep.subr.mxu0 0.0
    %47 = vmatpush1.msra.mxu0 %v32
    %48 = vmatprep.subr.mxu0 0.0
    %49 = vmatpush1.msra.mxu0 0.0
    %50 = vmatprep.subr.mxu0 0.0
    %51 = vmatpush1.msra.mxu0 0.0
    %52 = vmatprep.subr.mxu0 0.0
    %53 = vmatpush1.msra.mxu0 0.0
    %54 = vmatprep.subr.mxu0 0.0
    %55 = vmatpush1.msra.mxu0 0.0
    %56 = vmatprep.subr.mxu0 0.0
    %57 = vmatpush1.msra.mxu0 0.0
    %58 = vmatprep.subr.mxu0 0.0
    %59 = vmatpush1.msra.mxu0 0.0
    %60 = vmatprep.subr.mxu0 0.0
    %61 = vmatpush1.msra.mxu0 0.0
    %62 = vmatprep.subr.mxu0 0.0
    %63 = vmatpush1.msra.mxu0 0.0
    %64 = vmatprep.subr.mxu0 0.0
    %65 = vmatpush1.msra.mxu0 0.0
    %66 = vmatprep.subr.mxu0 0.0
    %67 = vmatpush1.msra.mxu0 0.0
    %68 = vmatprep.subr.mxu0 0.0
    %69 = vmatpush1.msra.mxu0 0.0
    %70 = vmatprep.subr.mxu0 0.0
    %71 = vmatpush1.msra.mxu0 0.0
    %72 = vmatprep.subr.mxu0 0.0
    %73 = vmatpush1.msra.mxu0 0.0
    %74 = vmatprep.subr.mxu0 0.0
    %75 = vmatpush1.msra.mxu0 0.0
    %76 = vmatprep.subr.mxu0 0.0
    %77 = vmatpush1.msra.mxu0 0.0
    %78 = vmatprep.subr.mxu0 0.0
    %79 = vmatpush1.msra.mxu0 0.0
    %80 = vmatprep.subr.mxu0 0.0
    %81 = vmatpush1.msra.mxu0 0.0
    %82 = vmatprep.subr.mxu0 0.0
    %83 = vmatpush1.msra.mxu0 0.0
    %84 = vmatprep.subr.mxu0 0.0
    %85 = vmatpush1.msra.mxu0 0.0
    %86 = vmatprep.subr.mxu0 0.0
    %87 = vmatpush1.msra.mxu0 0.0
    %88 = vmatprep.subr.mxu0 0.0
    %89 = vmatpush1.msra.mxu0 0.0
    %90 = vmatprep.subr.mxu0 0.0
    %91 = vmatpush1.msra.mxu0 0.0
    %92 = vmatprep.subr.mxu0 0.0
    %93 = vmatpush1.msra.mxu0 0.0
    %94 = vmatprep.subr.mxu0 0.0
    %95 = vmatpush1.msra.mxu0 0.0
    %96 = vmatprep.subr.mxu0 0.0
    %97 = vmatpush1.msra.mxu0 0.0
    %98 = vmatprep.subr.mxu0 0.0
    %99 = vmatpush1.msra.mxu0 0.0
    %100 = vmatprep.subr.mxu0 0.0
    %101 = vmatpush1.msra.mxu0 0.0
    %102 = vmatprep.subr.mxu0 0.0
    %103 = vmatpush1.msra.mxu0 0.0
    %104 = vmatprep.mubr.f32.mxu0 0.0
    %105 = vmatmul.mubr.f32.gmra.mrb[0].mxu0 %v35
    %v106 = vpop.f32.mrb[0].mxu0
    %v107 = vadd.f32 0.0, %v106
    %v108 = vpop.f32.mrb[0].mxu0
    %109 = vmatprep.mubr.f32.mxu0 0.0
    %110 = vmatmul.mubr.f32.gmra.mrb[0].mxu0 %v38
    %v111 = vpop.f32.mrb[0].mxu0
    %v112 = vadd.f32 0.0, %v111
    %v113 = vpop.f32.mrb[0].mxu0
    %114 = vdwg.mxu0
    %v116 = vsel %vm33, %v21, 0
    %v119 = vsel %vm33, %v22, 0
    %121 = vmatprep.subr.mxu0 0.0
    %122 = vmatpush1.msra.mxu0 %v25
    %123 = vmatprep.subr.mxu0 0.0
    %124 = vmatpush1.msra.mxu0 %v26
    %125 = vmatprep.subr.mxu0 0.0
    %126 = vmatpush1.msra.mxu0 %v27
    %127 = vmatprep.subr.mxu0 0.0
    %128 = vmatpush1.msra.mxu0 %v28
    %129 = vmatprep.subr.mxu0 0.0
    %130 = vmatpush1.msra.mxu0 0.0
    %131 = vmatprep.subr.mxu0 0.0
    %132 = vmatpush1.msra.mxu0 0.0
    %133 = vmatprep.subr.mxu0 0.0
    %134 = vmatpush1.msra.mxu0 0.0
    %135 = vmatprep.subr.mxu0 0.0
    %136 = vmatpush1.msra.mxu0 0.0
    %137 = vmatprep.subr.mxu0 0.0
    %138 = vmatpush1.msra.mxu0 0.0
    %139 = vmatprep.subr.mxu0 0.0
    %140 = vmatpush1.msra.mxu0 0.0
    %141 = vmatprep.subr.mxu0 0.0
    %142 = vmatpush1.msra.mxu0 0.0
    %143 = vmatprep.subr.mxu0 0.0
    %144 = vmatpush1.msra.mxu0 0.0
    %145 = vmatprep.subr.mxu0 0.0
    %146 = vmatpush1.msra.mxu0 0.0
    %147 = vmatprep.subr.mxu0 0.0
    %148 = vmatpush1.msra.mxu0 0.0
    %149 = vmatprep.subr.mxu0 0.0
    %150 = vmatpush1.msra.mxu0 0.0
    %151 = vmatprep.subr.mxu0 0.0
    %152 = vmatpush1.msra.mxu0 0.0
    %153 = vmatprep.subr.mxu0 0.0
    %154 = vmatpush1.msra.mxu0 0.0
    %155 = vmatprep.subr.mxu0 0.0
    %156 = vmatpush1.msra.mxu0 0.0
    %157 = vmatprep.subr.mxu0 0.0
    %158 = vmatpush1.msra.mxu0 0.0
    %159 = vmatprep.subr.mxu0 0.0
    %160 = vmatpush1.msra.mxu0 0.0
    %161 = vmatprep.subr.mxu0 0.0
    %162 = vmatpush1.msra.mxu0 0.0
    %163 = vmatprep.subr.mxu0 0.0
    %164 = vmatpush1.msra.mxu0 0.0
    %165 = vmatprep.subr.mxu0 0.0
    %166 = vmatpush1.msra.mxu0 0.0
    %167 = vmatprep.subr.mxu0 0.0
    %168 = vmatpush1.msra.mxu0 0.0
    %169 = vmatprep.subr.mxu0 0.0
    %170 = vmatpush1.msra.mxu0 0.0
    %171 = vmatprep.subr.mxu0 0.0
    %172 = vmatpush1.msra.mxu0 0.0
    %173 = vmatprep.subr.mxu0 0.0
    %174 = vmatpush1.msra.mxu0 0.0
    %175 = vmatprep.subr.mxu0 0.0
    %176 = vmatpush1.msra.mxu0 0.0
    %177 = vmatprep.subr.mxu0 0.0
    %178 = vmatpush1.msra.mxu0 0.0
    %179 = vmatprep.subr.mxu0 0.0
    %180 = vmatpush1.msra.mxu0 0.0
    %181 = vmatprep.subr.mxu0 0.0
    %182 = vmatpush1.msra.mxu0 0.0
    %183 = vmatprep.subr.mxu0 0.0
    %184 = vmatpush1.msra.mxu0 0.0
    %185 = vmatprep.mubr.f32.mxu0 0.0
    %186 = vmatmul.mubr.f32.gmra.mrb[0].mxu0 %v116
    %v187 = vpop.f32.mrb[0].mxu0
    %v188 = vadd.f32 %v107, %v187
    %v189 = vpop.f32.mrb[0].mxu0
    %190 = vmatprep.mubr.f32.mxu0 0.0
    %191 = vmatmul.mubr.f32.gmra.mrb[0].mxu0 %v119
    %v192 = vpop.f32.mrb[0].mxu0
    %v193 = vadd.f32 %v112, %v192
    %v194 = vpop.f32.mrb[0].mxu0
    %195 = vdwg.mxu0
    %v196 = vld [vmem:[%s2 + $0x40] sm:$0xff]
    %v197 = vld [vmem:[%s2 + $0x48] sm:$0xff]
    %v198 = vld [vmem:[%s2 + $0x50] sm:$0xff]
    %v199 = vld [vmem:[%s2 + $0x58] sm:$0xff]
    %v200 = vld [vmem:[%s2 + $0x60] sm:$0xff]
    %v201 = vld [vmem:[%s2 + $0x68] sm:$0xff]
    %v202 = vld [vmem:[%s2 + $0x70] sm:$0xff]
    %v203 = vld [vmem:[%s2 + $0x78] sm:$0xff]
    %204 = vmatprep.subr.mxu0 0.0
    %205 = vmatpush1.msra.mxu0 %v200
    %206 = vmatprep.subr.mxu0 0.0
    %207 = vmatpush1.msra.mxu0 %v201
    %208 = vmatprep.subr.mxu0 0.0
    %209 = vmatpush1.msra.mxu0 %v202
    %210 = vmatprep.subr.mxu0 0.0
    %211 = vmatpush1.msra.mxu0 %v203
    %212 = vmatprep.subr.mxu0 0.0
    %213 = vmatpush1.msra.mxu0 0.0
    %214 = vmatprep.subr.mxu0 0.0
    %215 = vmatpush1.msra.mxu0 0.0
    %216 = vmatprep.subr.mxu0 0.0
    %217 = vmatpush1.msra.mxu0 0.0
    %218 = vmatprep.subr.mxu0 0.0
    %219 = vmatpush1.msra.mxu0 0.0
    %220 = vmatprep.subr.mxu0 0.0
    %221 = vmatpush1.msra.mxu0 0.0
    %222 = vmatprep.subr.mxu0 0.0
    %223 = vmatpush1.msra.mxu0 0.0
    %224 = vmatprep.subr.mxu0 0.0
    %225 = vmatpush1.msra.mxu0 0.0
    %226 = vmatprep.subr.mxu0 0.0
    %227 = vmatpush1.msra.mxu0 0.0
    %228 = vmatprep.subr.mxu0 0.0
    %229 = vmatpush1.msra.mxu0 0.0
    %230 = vmatprep.subr.mxu0 0.0
    %231 = vmatpush1.msra.mxu0 0.0
    %232 = vmatprep.subr.mxu0 0.0
    %233 = vmatpush1.msra.mxu0 0.0
    %234 = vmatprep.subr.mxu0 0.0
    %235 = vmatpush1.msra.mxu0 0.0
    %236 = vmatprep.subr.mxu0 0.0
    %237 = vmatpush1.msra.mxu0 0.0
    %238 = vmatprep.subr.mxu0 0.0
    %239 = vmatpush1.msra.mxu0 0.0
    %240 = vmatprep.subr.mxu0 0.0
    %241 = vmatpush1.msra.mxu0 0.0
    %242 = vmatprep.subr.mxu0 0.0
    %243 = vmatpush1.msra.mxu0 0.0
    %244 = vmatprep.subr.mxu0 0.0
    %245 = vmatpush1.msra.mxu0 0.0
    %246 = vmatprep.subr.mxu0 0.0
    %247 = vmatpush1.msra.mxu0 0.0
    %248 = vmatprep.subr.mxu0 0.0
    %249 = vmatpush1.msra.mxu0 0.0
    %250 = vmatprep.subr.mxu0 0.0
    %251 = vmatpush1.msra.mxu0 0.0
    %252 = vmatprep.subr.mxu0 0.0
    %253 = vmatpush1.msra.mxu0 0.0
    %254 = vmatprep.subr.mxu0 0.0
    %255 = vmatpush1.msra.mxu0 0.0
    %256 = vmatprep.subr.mxu0 0.0
    %257 = vmatpush1.msra.mxu0 0.0
    %258 = vmatprep.subr.mxu0 0.0
    %259 = vmatpush1.msra.mxu0 0.0
    %260 = vmatprep.subr.mxu0 0.0
    %261 = vmatpush1.msra.mxu0 0.0
    %262 = vmatprep.subr.mxu0 0.0
    %263 = vmatpush1.msra.mxu0 0.0
    %264 = vmatprep.subr.mxu0 0.0
    %265 = vmatpush1.msra.mxu0 0.0
    %266 = vmatprep.subr.mxu0 0.0
    %267 = vmatpush1.msra.mxu0 0.0
    %268 = vmatprep.mubr.f32.mxu0 0.0
    %269 = vmatmul.mubr.f32.gmra.mrb[0].mxu0 %v35
    %v270 = vpop.f32.mrb[0].mxu0
    %v271 = vadd.f32 0.0, %v270
    %v272 = vpop.f32.mrb[0].mxu0
    %273 = vmatprep.mubr.f32.mxu0 0.0
    %274 = vmatmul.mubr.f32.gmra.mrb[0].mxu0 %v38
    %v275 = vpop.f32.mrb[0].mxu0
    %v276 = vadd.f32 0.0, %v275
    %v277 = vpop.f32.mrb[0].mxu0
    %278 = vdwg.mxu0
    %279 = vmatprep.subr.mxu0 0.0
    %280 = vmatpush1.msra.mxu0 %v196
    %281 = vmatprep.subr.mxu0 0.0
    %282 = vmatpush1.msra.mxu0 %v197
    %283 = vmatprep.subr.mxu0 0.0
    %284 = vmatpush1.msra.mxu0 %v198
    %285 = vmatprep.subr.mxu0 0.0
    %286 = vmatpush1.msra.mxu0 %v199
    %287 = vmatprep.subr.mxu0 0.0
    %288 = vmatpush1.msra.mxu0 0.0
    %289 = vmatprep.subr.mxu0 0.0
    %290 = vmatpush1.msra.mxu0 0.0
    %291 = vmatprep.subr.mxu0 0.0
    %292 = vmatpush1.msra.mxu0 0.0
    %293 = vmatprep.subr.mxu0 0.0
    %294 = vmatpush1.msra.mxu0 0.0
    %295 = vmatprep.subr.mxu0 0.0
    %296 = vmatpush1.msra.mxu0 0.0
    %297 = vmatprep.subr.mxu0 0.0
    %298 = vmatpush1.msra.mxu0 0.0
    %299 = vmatprep.subr.mxu0 0.0
    %300 = vmatpush1.msra.mxu0 0.0
    %301 = vmatprep.subr.mxu0 0.0
    %302 = vmatpush1.msra.mxu0 0.0
    %303 = vmatprep.subr.mxu0 0.0
    %304 = vmatpush1.msra.mxu0 0.0
    %305 = vmatprep.subr.mxu0 0.0
    %306 = vmatpush1.msra.mxu0 0.0
    %307 = vmatprep.subr.mxu0 0.0
    %308 = vmatpush1.msra.mxu0 0.0
    %309 = vmatprep.subr.mxu0 0.0
    %310 = vmatpush1.msra.mxu0 0.0
    %311 = vmatprep.subr.mxu0 0.0
    %312 = vmatpush1.msra.mxu0 0.0
    %313 = vmatprep.subr.mxu0 0.0
    %314 = vmatpush1.msra.mxu0 0.0
    %315 = vmatprep.subr.mxu0 0.0
    %316 = vmatpush1.msra.mxu0 0.0
    %317 = vmatprep.subr.mxu0 0.0
    %318 = vmatpush1.msra.mxu0 0.0
    %319 = vmatprep.subr.mxu0 0.0
    %320 = vmatpush1.msra.mxu0 0.0
    %321 = vmatprep.subr.mxu0 0.0
    %322 = vmatpush1.msra.mxu0 0.0
    %323 = vmatprep.subr.mxu0 0.0
    %324 = vmatpush1.msra.mxu0 0.0
    %325 = vmatprep.subr.mxu0 0.0
    %326 = vmatpush1.msra.mxu0 0.0
    %327 = vmatprep.subr.mxu0 0.0
    %328 = vmatpush1.msra.mxu0 0.0
    %329 = vmatprep.subr.mxu0 0.0
    %330 = vmatpush1.msra.mxu0 0.0
    %331 = vmatprep.subr.mxu0 0.0
    %332 = vmatpush1.msra.mxu0 0.0
    %333 = vmatprep.subr.mxu0 0.0
    %334 = vmatpush1.msra.mxu0 0.0
    %335 = vmatprep.subr.mxu0 0.0
    %336 = vmatpush1.msra.mxu0 0.0
    %337 = vmatprep.subr.mxu0 0.0
    %338 = vmatpush1.msra.mxu0 0.0
    %339 = vmatprep.subr.mxu0 0.0
    %340 = vmatpush1.msra.mxu0 0.0
    %341 = vmatprep.subr.mxu0 0.0
    %342 = vmatpush1.msra.mxu0 0.0
    %343 = vmatprep.mubr.f32.mxu0 0.0
    %344 = vmatmul.mubr.f32.gmra.mrb[0].mxu0 %v116
    %v345 = vpop.f32.mrb[0].mxu0
    %v346 = vadd.f32 %v271, %v345
    %v347 = vpop.f32.mrb[0].mxu0
    %348 = vmatprep.mubr.f32.mxu0 0.0
    %349 = vmatmul.mubr.f32.gmra.mrb[0].mxu0 %v119
    %v350 = vpop.f32.mrb[0].mxu0
    %v351 = vadd.f32 %v276, %v350
    %v352 = vpop.f32.mrb[0].mxu0
    %353 = vdwg.mxu0
    %v354 = vld [vmem:[%s2 + $0x80] sm:$0xff]
    %v355 = vld [vmem:[%s2 + $0x88] sm:$0xff]
    %v356 = vld [vmem:[%s2 + $0x90] sm:$0xff]
    %v357 = vld [vmem:[%s2 + $0x98] sm:$0xff]
    %v358 = vld [vmem:[%s2 + $0xa0] sm:$0xff]
    %v359 = vld [vmem:[%s2 + $0xa8] sm:$0xff]
    %v360 = vld [vmem:[%s2 + $0xb0] sm:$0xff]
    %v361 = vld [vmem:[%s2 + $0xb8] sm:$0xff]
    %362 = vmatprep.subr.mxu0 0.0
    %363 = vmatpush1.msra.mxu0 %v358
    %364 = vmatprep.subr.mxu0 0.0
    %365 = vmatpush1.msra.mxu0 %v359
    %366 = vmatprep.subr.mxu0 0.0
    %367 = vmatpush1.msra.mxu0 %v360
    %368 = vmatprep.subr.mxu0 0.0
    %369 = vmatpush1.msra.mxu0 %v361
    %370 = vmatprep.subr.mxu0 0.0
    %371 = vmatpush1.msra.mxu0 0.0
    %372 = vmatprep.subr.mxu0 0.0
    %373 = vmatpush1.msra.mxu0 0.0
    %374 = vmatprep.subr.mxu0 0.0
    %375 = vmatpush1.msra.mxu0 0.0
    %376 = vmatprep.subr.mxu0 0.0
    %377 = vmatpush1.msra.mxu0 0.0
    %378 = vmatprep.subr.mxu0 0.0
    %379 = vmatpush1.msra.mxu0 0.0
    %380 = vmatprep.subr.mxu0 0.0
    %381 = vmatpush1.msra.mxu0 0.0
    %382 = vmatprep.subr.mxu0 0.0
    %383 = vmatpush1.msra.mxu0 0.0
    %384 = vmatprep.subr.mxu0 0.0
    %385 = vmatpush1.msra.mxu0 0.0
    %386 = vmatprep.subr.mxu0 0.0
    %387 = vmatpush1.msra.mxu0 0.0
    %388 = vmatprep.subr.mxu0 0.0
    %389 = vmatpush1.msra.mxu0 0.0
    %390 = vmatprep.subr.mxu0 0.0
    %391 = vmatpush1.msra.mxu0 0.0
    %392 = vmatprep.subr.mxu0 0.0
    %393 = vmatpush1.msra.mxu0 0.0
    %394 = vmatprep.subr.mxu0 0.0
    %395 = vmatpush1.msra.mxu0 0.0
    %396 = vmatprep.subr.mxu0 0.0
    %397 = vmatpush1.msra.mxu0 0.0
    %398 = vmatprep.subr.mxu0 0.0
    %399 = vmatpush1.msra.mxu0 0.0
    %400 = vmatprep.subr.mxu0 0.0
    %401 = vmatpush1.msra.mxu0 0.0
    %402 = vmatprep.subr.mxu0 0.0
    %403 = vmatpush1.msra.mxu0 0.0
    %404 = vmatprep.subr.mxu0 0.0
    %405 = vmatpush1.msra.mxu0 0.0
    %406 = vmatprep.subr.mxu0 0.0
    %407 = vmatpush1.msra.mxu0 0.0
    %408 = vmatprep.subr.mxu0 0.0
    %409 = vmatpush1.msra.mxu0 0.0
    %410 = vmatprep.subr.mxu0 0.0
    %411 = vmatpush1.msra.mxu0 0.0
    %412 = vmatprep.subr.mxu0 0.0
    %413 = vmatpush1.msra.mxu0 0.0
    %414 = vmatprep.subr.mxu0 0.0
    %415 = vmatpush1.msra.mxu0 0.0
    %416 = vmatprep.subr.mxu0 0.0
    %417 = vmatpush1.msra.mxu0 0.0
    %418 = vmatprep.subr.mxu0 0.0
    %419 = vmatpush1.msra.mxu0 0.0
    %420 = vmatprep.subr.mxu0 0.0
    %421 = vmatpush1.msra.mxu0 0.0
    %422 = vmatprep.subr.mxu0 0.0
    %423 = vmatpush1.msra.mxu0 0.0
    %424 = vmatprep.subr.mxu0 0.0
    %425 = vmatpush1.msra.mxu0 0.0
    %426 = vmatprep.mubr.f32.mxu0 0.0
    %427 = vmatmul.mubr.f32.gmra.mrb[0].mxu0 %v35
    %v428 = vpop.f32.mrb[0].mxu0
    %v429 = vadd.f32 0.0, %v428
    %v430 = vpop.f32.mrb[0].mxu0
    %431 = vmatprep.mubr.f32.mxu0 0.0
    %432 = vmatmul.mubr.f32.gmra.mrb[0].mxu0 %v38
    %v433 = vpop.f32.mrb[0].mxu0
    %v434 = vadd.f32 0.0, %v433
    %v435 = vpop.f32.mrb[0].mxu0
    %436 = vdwg.mxu0
    %437 = vmatprep.subr.mxu0 0.0
    %438 = vmatpush1.msra.mxu0 %v354
    %439 = vmatprep.subr.mxu0 0.0
    %440 = vmatpush1.msra.mxu0 %v355
    %441 = vmatprep.subr.mxu0 0.0
    %442 = vmatpush1.msra.mxu0 %v356
    %443 = vmatprep.subr.mxu0 0.0
    %444 = vmatpush1.msra.mxu0 %v357
    %445 = vmatprep.subr.mxu0 0.0
    %446 = vmatpush1.msra.mxu0 0.0
    %447 = vmatprep.subr.mxu0 0.0
    %448 = vmatpush1.msra.mxu0 0.0
    %449 = vmatprep.subr.mxu0 0.0
    %450 = vmatpush1.msra.mxu0 0.0
    %451 = vmatprep.subr.mxu0 0.0
    %452 = vmatpush1.msra.mxu0 0.0
    %453 = vmatprep.subr.mxu0 0.0
    %454 = vmatpush1.msra.mxu0 0.0
    %455 = vmatprep.subr.mxu0 0.0
    %456 = vmatpush1.msra.mxu0 0.0
    %457 = vmatprep.subr.mxu0 0.0
    %458 = vmatpush1.msra.mxu0 0.0
    %459 = vmatprep.subr.mxu0 0.0
    %460 = vmatpush1.msra.mxu0 0.0
    %461 = vmatprep.subr.mxu0 0.0
    %462 = vmatpush1.msra.mxu0 0.0
    %463 = vmatprep.subr.mxu0 0.0
    %464 = vmatpush1.msra.mxu0 0.0
    %465 = vmatprep.subr.mxu0 0.0
    %466 = vmatpush1.msra.mxu0 0.0
    %467 = vmatprep.subr.mxu0 0.0
    %468 = vmatpush1.msra.mxu0 0.0
    %469 = vmatprep.subr.mxu0 0.0
    %470 = vmatpush1.msra.mxu0 0.0
    %471 = vmatprep.subr.mxu0 0.0
    %472 = vmatpush1.msra.mxu0 0.0
    %473 = vmatprep.subr.mxu0 0.0
    %474 = vmatpush1.msra.mxu0 0.0
    %475 = vmatprep.subr.mxu0 0.0
    %476 = vmatpush1.msra.mxu0 0.0
    %477 = vmatprep.subr.mxu0 0.0
    %478 = vmatpush1.msra.mxu0 0.0
    %479 = vmatprep.subr.mxu0 0.0
    %480 = vmatpush1.msra.mxu0 0.0
    %481 = vmatprep.subr.mxu0 0.0
    %482 = vmatpush1.msra.mxu0 0.0
    %483 = vmatprep.subr.mxu0 0.0
    %484 = vmatpush1.msra.mxu0 0.0
    %485 = vmatprep.subr.mxu0 0.0
    %486 = vmatpush1.msra.mxu0 0.0
    %487 = vmatprep.subr.mxu0 0.0
    %488 = vmatpush1.msra.mxu0 0.0
    %489 = vmatprep.subr.mxu0 0.0
    %490 = vmatpush1.msra.mxu0 0.0
    %491 = vmatprep.subr.mxu0 0.0
    %492 = vmatpush1.msra.mxu0 0.0
    %493 = vmatprep.subr.mxu0 0.0
    %494 = vmatpush1.msra.mxu0 0.0
    %495 = vmatprep.subr.mxu0 0.0
    %496 = vmatpush1.msra.mxu0 0.0
    %497 = vmatprep.subr.mxu0 0.0
    %498 = vmatpush1.msra.mxu0 0.0
    %499 = vmatprep.subr.mxu0 0.0
    %500 = vmatpush1.msra.mxu0 0.0
    %501 = vmatprep.mubr.f32.mxu0 0.0
    %502 = vmatmul.mubr.f32.gmra.mrb[0].mxu0 %v116
    %v503 = vpop.f32.mrb[0].mxu0
    %v504 = vadd.f32 %v429, %v503
    %v505 = vpop.f32.mrb[0].mxu0
    %506 = vmatprep.mubr.f32.mxu0 0.0
    %507 = vmatmul.mubr.f32.gmra.mrb[0].mxu0 %v119
    %v508 = vpop.f32.mrb[0].mxu0
    %v509 = vadd.f32 %v434, %v508
    %v510 = vpop.f32.mrb[0].mxu0
    %511 = vdwg.mxu0
    %vm514 = vcmask 1040384
    %v515 = vrot.slane %v346, 7
    %v516 = vrot.slane %v351, 7
    %v517 = vsel %vm514, %v515, %v516
    %v520 = vsel %vm514, 0.0, %v515
    %vm523 = vcmask 1046528
    %v524 = vrot.slane %v504, 1
    %v525 = vrot.slane %v509, 1
    %v526 = vsel %vm523, %v524, %v525
    %v529 = vsel %vm523, %v525, 0.0
    %v530 = vlaneseq
    %v531 = vshrl.u32 %v530, 7
    %v532 = vadd.s32 %v531, 8
    %vm533 = vcmp.lt.s32.totalorder %v531, 0
    %v534 = vsub.s32 0, %v531
    %v535 = vsel %vm533, %v534, %v531
    %v536 = vshrl.u32 %v535, 3
    %v537 = vand.u32 %v535, 7
    %v538 = vsub.s32 0, %v537
    %v539 = vsel %vm533, %v538, %v537
    %vm540 = vcmp.lt.s32.totalorder %v532, 0
    %v541 = vsub.s32 0, %v532
    %v542 = vsel %vm540, %v541, %v532
    %v543 = vshrl.u32 %v542, 3
    %v544 = vand.u32 %v542, 7
    %v545 = vsub.s32 0, %v544
    %v546 = vsel %vm540, %v545, %v544
    %vm547 = vcmp.ne.s32.totalorder %v539, 0
    %vm548 = vcmp.ne.s32.totalorder %v546, 0
    %vm549 = vcmp.lt.s32.totalorder %v539, 0
    %vm550 = vcmp.lt.s32.totalorder %v546, 0
    %vm551 = vmand %vm549, %vm547
    %vm552 = vmand %vm550, %vm548
    %v553 = vadd.s32 %v539, 8
    %v554 = vadd.s32 %v546, 8
    %v555 = vsel %vm551, %v553, %v539
    %v556 = vsel %vm552, %v554, %v546
    %vm557 = vcmp.eq.s32.totalorder %v555, 0
    %vm558 = vcmp.eq.s32.totalorder %v556, 0
    %v559 = vsel %vm557, 0.0, %v520
    %v560 = vsel %vm558, 0.0, %v517
    %vm561 = vcmp.eq.s32.totalorder %v555, 7
    %vm562 = vcmp.eq.s32.totalorder %v556, 7
    %v563 = vsel %vm561, 0.0, %v526
    %v564 = vsel %vm562, 0.0, %v529
    %v565 = vld [vmem:[%s4] sm:$0x1]
    %v566 = vld [vmem:[%s4 + $0x1] sm:$0x1]
    %v567 = vadd.f32 %v188, %v559
    %v568 = vadd.f32 %v193, %v560
    %v569 = vadd.f32 %v567, %v563
    %v570 = vadd.f32 %v568, %v564
    %v571 = vlaneseq
    %v572 = vshrl.u32 %v571, 7
    %v573 = vsub.s32 0, %v572
    %v574 = vrot.slane %v565, %v573
    %v575 = vadd.f32 %v569, %v574
    %v576 = vadd.f32 %v570, %v574
    %v577 = vmax.f32 %v575, 0.0
    %v578 = vmax.f32 %v576, 0.0
    %v579 = vld [vmem:[%s3] sm:$0xff]
    %v580 = vld [vmem:[%s3 + $0x8] sm:$0xff]
    %v581 = vld [vmem:[%s3 + $0x10] sm:$0xff]
    %v582 = vld [vmem:[%s3 + $0x18] sm:$0xff]
    %v583 = vlaneseq
    %v584 = vshrl.u32 %v583, 7
    %v585 = vsub.s32 0, %v584
    %v586 = vrot.slane %v566, %v585
    %v588 = vsel %vm33, %v577, 0
    %v591 = vsel %vm33, %v578, 0
    %593 = vmatprep.subr.mxu0 0.0
    %594 = vmatpush1.msra.mxu0 %v579
    %595 = vmatprep.subr.mxu0 0.0
    %596 = vmatpush1.msra.mxu0 %v580
    %597 = vmatprep.subr.mxu0 0.0
    %598 = vmatpush1.msra.mxu0 %v581
    %599 = vmatprep.subr.mxu0 0.0
    %600 = vmatpush1.msra.mxu0 %v582
    %601 = vmatprep.subr.mxu0 0.0
    %602 = vmatpush1.msra.mxu0 0.0
    %603 = vmatprep.subr.mxu0 0.0
    %604 = vmatpush1.msra.mxu0 0.0
    %605 = vmatprep.subr.mxu0 0.0
    %606 = vmatpush1.msra.mxu0 0.0
    %607 = vmatprep.subr.mxu0 0.0
    %608 = vmatpush1.msra.mxu0 0.0
    %609 = vmatprep.subr.mxu0 0.0
    %610 = vmatpush1.msra.mxu0 0.0
    %611 = vmatprep.subr.mxu0 0.0
    %612 = vmatpush1.msra.mxu0 0.0
    %613 = vmatprep.subr.mxu0 0.0
    %614 = vmatpush1.msra.mxu0 0.0
    %615 = vmatprep.subr.mxu0 0.0
    %616 = vmatpush1.msra.mxu0 0.0
    %617 = vmatprep.subr.mxu0 0.0
    %618 = vmatpush1.msra.mxu0 0.0
    %619 = vmatprep.subr.mxu0 0.0
    %620 = vmatpush1.msra.mxu0 0.0
    %621 = vmatprep.subr.mxu0 0.0
    %622 = vmatpush1.msra.mxu0 0.0
    %623 = vmatprep.subr.mxu0 0.0
    %624 = vmatpush1.msra.mxu0 0.0
    %625 = vmatprep.subr.mxu0 0.0
    %626 = vmatpush1.msra.mxu0 0.0
    %627 = vmatprep.subr.mxu0 0.0
    %628 = vmatpush1.msra.mxu0 0.0
    %629 = vmatprep.subr.mxu0 0.0
    %630 = vmatpush1.msra.mxu0 0.0
    %631 = vmatprep.subr.mxu0 0.0
    %632 = vmatpush1.msra.mxu0 0.0
    %633 = vmatprep.subr.mxu0 0.0
    %634 = vmatpush1.msra.mxu0 0.0
    %635 = vmatprep.subr.mxu0 0.0
    %636 = vmatpush1.msra.mxu0 0.0
    %637 = vmatprep.subr.mxu0 0.0
    %638 = vmatpush1.msra.mxu0 0.0
    %639 = vmatprep.subr.mxu0 0.0
    %640 = vmatpush1.msra.mxu0 0.0
    %641 = vmatprep.subr.mxu0 0.0
    %642 = vmatpush1.msra.mxu0 0.0
    %643 = vmatprep.subr.mxu0 0.0
    %644 = vmatpush1.msra.mxu0 0.0
    %645 = vmatprep.subr.mxu0 0.0
    %646 = vmatpush1.msra.mxu0 0.0
    %647 = vmatprep.subr.mxu0 0.0
    %648 = vmatpush1.msra.mxu0 0.0
    %649 = vmatprep.subr.mxu0 0.0
    %650 = vmatpush1.msra.mxu0 0.0
    %651 = vmatprep.subr.mxu0 0.0
    %652 = vmatpush1.msra.mxu0 0.0
    %653 = vmatprep.subr.mxu0 0.0
    %654 = vmatpush1.msra.mxu0 0.0
    %655 = vmatprep.subr.mxu0 0.0
    %656 = vmatpush1.msra.mxu0 0.0
    %657 = vmatprep.mubr.f32.mxu0 0.0
    %658 = vmatmul.mubr.f32.gmra.mrb[0].mxu0 %v588
    %v659 = vpop.f32.mrb[0].mxu0
    %v660 = vadd.f32 %v586, %v659
    %v661 = vpop.f32.mrb[0].mxu0
    %662 = vmatprep.mubr.f32.mxu0 0.0
    %663 = vmatmul.mubr.f32.gmra.mrb[0].mxu0 %v591
    %v664 = vpop.f32.mrb[0].mxu0
    %v665 = vadd.f32 %v586, %v664
    %v666 = vpop.f32.mrb[0].mxu0
    %667 = vdwg.mxu0
    %v668 = vadd.f32 %v660, %v21
    %v669 = vadd.f32 %v665, %v22
    %v670 = vld [vmem:[%s4 + $0x2] sm:$0x1]
    %v671 = vld [vmem:[%s4 + $0x3] sm:$0x1]
    %v672 = vsel %vm33, %v668, 0.0
    %673 = vadd.xlane.f32.xlu0 %v672
    %v674 = vpop.xlane.xlu0 %673
    %v675 = vsel %vm33, %v669, 0.0
    %676 = vadd.xlane.f32.xlu0 %v675
    %v677 = vpop.xlane.xlu0 %676
    %v678 = vrcp.pop 32.0
    %v679 = vmul.f32 %v674, %v678
    %v680 = vmul.f32 %v677, %v678
    %v681 = vmul.f32 %v668, %v668
    %v682 = vmul.f32 %v669, %v669
    %v683 = vsel %vm33, %v681, 0.0
    %684 = vadd.xlane.f32.xlu0 %v683
    %v685 = vpop.xlane.xlu0 %684
    %v686 = vsel %vm33, %v682, 0.0
    %687 = vadd.xlane.f32.xlu0 %v686
    %v688 = vpop.xlane.xlu0 %687
    %v689 = vmul.f32 %v685, %v678
    %v690 = vmul.f32 %v688, %v678
    %v691 = vmul.f32 %v679, %v679
    %v692 = vmul.f32 %v680, %v680
    %v693 = vsub.f32 %v689, %v691
    %v694 = vsub.f32 %v690, %v692
    %v695 = vsub.f32 %v668, %v679
    %v696 = vsub.f32 %v669, %v680
    %v697 = vadd.f32 %v693, 1e-05
    %v698 = vadd.f32 %v694, 1e-05
    %v699 = vrsqrt.pop %v697
    %v700 = vrsqrt.pop %v698
    %v701 = vmul.f32 %v695, %v699
    %v702 = vmul.f32 %v696, %v700
    %v703 = vlaneseq
    %v704 = vshrl.u32 %v703, 7
    %v705 = vsub.s32 0, %v704
    %v706 = vrot.slane %v670, %v705
    %v707 = vmul.f32 %v701, %v706
    %v708 = vmul.f32 %v702, %v706
    %v709 = vlaneseq
    %v710 = vshrl.u32 %v709, 7
    %v711 = vsub.s32 0, %v710
    %v712 = vrot.slane %v671, %v711
    %v713 = vadd.f32 %v707, %v712
    %v714 = vadd.f32 %v708, %v712
    %v715 = vadd.f32 %v660, %v23
    %v716 = vadd.f32 %v665, %v24
    %v717 = vld [vmem:[%s4 + $0x4] sm:$0x1]
    %v718 = vld [vmem:[%s4 + $0x5] sm:$0x1]
    %v719 = vsel %vm33, %v715, 0.0
    %720 = vadd.xlane.f32.xlu0 %v719
    %v721 = vpop.xlane.xlu0 %720
    %v722 = vsel %vm33, %v716, 0.0
    %723 = vadd.xlane.f32.xlu0 %v722
    %v724 = vpop.xlane.xlu0 %723
    %v725 = vmul.f32 %v721, %v678
    %v726 = vmul.f32 %v724, %v678
    %v727 = vmul.f32 %v715, %v715
    %v728 = vmul.f32 %v716, %v716
    %v729 = vsel %vm33, %v727, 0.0
    %730 = vadd.xlane.f32.xlu0 %v729
    %v731 = vpop.xlane.xlu0 %730
    %v732 = vsel %vm33, %v728, 0.0
    %733 = vadd.xlane.f32.xlu0 %v732
    %v734 = vpop.xlane.xlu0 %733
    %v735 = vmul.f32 %v731, %v678
    %v736 = vmul.f32 %v734, %v678
    %v737 = vmul.f32 %v725, %v725
    %v738 = vmul.f32 %v726, %v726
    %v739 = vsub.f32 %v735, %v737
    %v740 = vsub.f32 %v736, %v738
    %v741 = vsub.f32 %v715, %v725
    %v742 = vsub.f32 %v716, %v726
    %v743 = vadd.f32 %v739, 1e-05
    %v744 = vadd.f32 %v740, 1e-05
    %v745 = vrsqrt.pop %v743
    %v746 = vrsqrt.pop %v744
    %v747 = vmul.f32 %v741, %v745
    %v748 = vmul.f32 %v742, %v746
    %v749 = vlaneseq
    %v750 = vshrl.u32 %v749, 7
    %v751 = vsub.s32 0, %v750
    %v752 = vrot.slane %v717, %v751
    %v753 = vmul.f32 %v747, %v752
    %v754 = vmul.f32 %v748, %v752
    %v755 = vlaneseq
    %v756 = vshrl.u32 %v755, 7
    %v757 = vsub.s32 0, %v756
    %v758 = vrot.slane %v718, %v757
    %v759 = vadd.f32 %v753, %v758
    %v760 = vadd.f32 %v754, %v758
    %763 = vrot.lane.b32.xlu0 %v759, 32
    %v764 = vpop.permute.xlu0 %763
    %765 = vrot.lane.b32.xlu0 %v760, 32
    %v766 = vpop.permute.xlu0 %765
    %v769 = vsel %vm33, %v713, %v764
    %v770 = vsel %vm33, %v714, %v766
    %vm771 = vcmask 523264
    %772 = vst.msk [vmem:[#allocation2] sm:$0xff] %vm771, %v769
    %773 = vst.msk [vmem:[#allocation2 + $0x8] sm:$0xff] %vm771, %v770
    // Predicated region
    $region22: #{tpu_custom_call.1} parent=1 // pred_check
      _
    $region23: #{tpu_custom_call.1} parent=1 // pred_check_branch
      %775 = sbr.rel (0) target = $region25
    $region24: #{tpu_custom_call.1} parent=1 // pred_region
      %s777 = ssub.s32 256, 256
      %778 = vsyncadd [#allocation3], %s777
      %s779 = sshll.u32 [#allocation2], 4
      %s780 = int_to_ptr.vmem [resolvable:$true] %s779
      %785 = dma.vmem_to_hbm [thread:$0]  %s780, 256, %s5, [#allocation3], 128, 128, 8
    $region25: #{tpu_custom_call.1} parent=1 // pred_fallthru
      _
    // Predicated region
    $region26: #{tpu_custom_call.1} parent=1 // pred_check
      _
    $region27: #{tpu_custom_call.1} parent=1 // pred_check_branch
      %787 = sbr.rel (0) target = $region29
    $region28: #{tpu_custom_call.1} parent=1 // pred_region
      %788 = dma.done [#allocation3], 256
    $region29: #{tpu_custom_call.1} parent=1 // pred_fallthru
      _
    %789 = vsyncpa [#allocation3], 1

</llo_original>
